<compile_context>
chip_gen: v7x
topology: tpu7x:2x2x1
jax: 0.10.0
libtpu: 0.0.40
codegen_flags: <defaults>
</compile_context>

<pallas_src>
import jax
import jax.numpy as jnp
from jax.experimental import pallas as pl
from jax.experimental.pallas import tpu as pltpu


# Blob row layout (all rows are W lanes wide, f32):
#   rows [0, 8)        : W1 fused  -- rows 0:state_dim used, rest zero
#   rows [8, 16)       : biases    -- row 8 = b1, row 9 = b2, row 10 = b3 (head)
#   rows [16, 16+W)    : W2 fused block-diagonal (actor | critic)
#   rows [16+W, 16+2W) : W3 head, col 0..action_dim-1 = actor, col action_dim = critic
def actor_critic_kernel(x_ref, p_ref, o_ref):
    S = x_ref.shape[1]            # state_dim (tiny)
    W = p_ref.shape[1]            # lane-padded fused hidden width (>=128)
    x = x_ref[...]                # (TB, S)

    # ---- Layer 1: K = S is tiny -> VPU broadcast multiply-adds (skip MXU) ----
    z = x[:, 0:1] * p_ref[0:1, :] + p_ref[8:9, :]          # (TB, W) + b1
    for k in range(1, S):                                  # static unroll (S=3)
        z = z + x[:, k:k + 1] * p_ref[k:k + 1, :]
    h1 = jnp.tanh(z)

    # ---- Layer 2: fused block-diagonal hidden matmul on the MXU ----
    h2 = jnp.tanh(
        jnp.dot(h1, p_ref[16:16 + W, :], preferred_element_type=jnp.float32)
        + p_ref[9:10, :]
    )

    # ---- Layer 3: fused head matmul; lane-dense (TB, W) store ----
    o_ref[...] = (
        jnp.dot(h2, p_ref[16 + W:16 + 2 * W, :], preferred_element_type=jnp.float32)
        + p_ref[10:11, :]
    ).astype(o_ref.dtype)


def actor_critic_forward(state, blob, log_std, *, action_dim=1, block_b=256):
    """state: (B, state_dim) f32. blob: packed params (16+2W, W). Returns (mean, std, value)."""
    B, S = state.shape
    W = blob.shape[1]
    assert blob.shape[0] == 16 + 2 * W

    # Batch tile: multiple of 8 sublanes.  Small batches -> one block;
    # large batches -> block_b-sized tiles so the state/output DMA pipelines
    # behind the matmul chain.
    if B <= block_b:
        TB = max(8, ((B + 7) // 8) * 8)
    else:
        TB = block_b
    B_pad = ((B + TB - 1) // TB) * TB
    if B_pad != B:
        state = jnp.pad(state, ((0, B_pad - B), (0, 0)))

    out = pl.pallas_call(
        actor_critic_kernel,
        out_shape=jax.ShapeDtypeStruct((B_pad, W), jnp.float32),
        grid=(B_pad // TB,),
        in_specs=[
            pl.BlockSpec((TB, S), lambda i: (i, 0)),       # streamed batch tile
            pl.BlockSpec(blob.shape, lambda i: (0, 0)),    # resident fused params
        ],
        out_specs=pl.BlockSpec((TB, W), lambda i: (i, 0)),  # lane-dense output slab
        compiler_params=pltpu.CompilerParams(
            dimension_semantics=("parallel",),  # megacore split on v7x
            # NOTE: total VMEM here is < 1 MiB; set vmem_limit_bytes explicitly
            # if hidden/state_dim are later widened (v7x has only 64 MiB).
        ),
    )(state, blob)

    mean = out[:B, :action_dim]            # actor mean, (B, action_dim)
    value = out[:B, action_dim]            # critic value, (B,)  (== .squeeze(1))
    std = jnp.exp(log_std)                 # Normal scale (policy_log_std.exp())
    return mean, std, value


# ---------------- parameter construction / packing ----------------

def init_params(key, state_dim=3, hidden=32, action_dim=1):
    """nn.Linear-style U(-1/sqrt(fan_in), 1/sqrt(fan_in)); weights stored (in, out)."""
    def lin(k, fan_in, fan_out):
        kw, kb = jax.random.split(k)
        bound = 1.0 / jnp.sqrt(jnp.float32(fan_in))
        w = jax.random.uniform(kw, (fan_in, fan_out), jnp.float32, -bound, bound)
        b = jax.random.uniform(kb, (fan_out,), jnp.float32, -bound, bound)
        return w, b

    ka, kc = jax.random.split(key)
    ka = jax.random.split(ka, 3)
    kc = jax.random.split(kc, 3)
    actor, critic = {}, {}
    actor["w1"], actor["b1"] = lin(ka[0], state_dim, hidden)
    actor["w2"], actor["b2"] = lin(ka[1], hidden, hidden)
    actor["w3"], actor["b3"] = lin(ka[2], hidden, action_dim)
    critic["w1"], critic["b1"] = lin(kc[0], state_dim, hidden)
    critic["w2"], critic["b2"] = lin(kc[1], hidden, hidden)
    critic["w3"], critic["b3"] = lin(kc[2], hidden, 1)
    log_std = jnp.zeros((1, action_dim), jnp.float32)      # policy_log_std
    return {"actor": actor, "critic": critic, "log_std": log_std}


def pack_params(params, state_dim, hidden, action_dim):
    """Pack actor+critic weights into one lane-padded block-diagonal blob."""
    a, c = params["actor"], params["critic"]
    HC = 2 * hidden                                   # fused hidden (actor | critic)
    W = max(128, ((HC + 127) // 128) * 128)           # lane-padded width
    assert action_dim + 1 <= 128

    w1 = jnp.zeros((8, W), jnp.float32)
    w1 = w1.at[:state_dim, :hidden].set(a["w1"])
    w1 = w1.at[:state_dim, hidden:HC].set(c["w1"])

    b = jnp.zeros((8, W), jnp.float32)
    b = b.at[0, :hidden].set(a["b1"])
    b = b.at[0, hidden:HC].set(c["b1"])
    b = b.at[1, :hidden].set(a["b2"])
    b = b.at[1, hidden:HC].set(c["b2"])
    b = b.at[2, :action_dim].set(a["b3"])
    b = b.at[2, action_dim].set(c["b3"][0])

    w2 = jnp.zeros((W, W), jnp.float32)
    w2 = w2.at[:hidden, :hidden].set(a["w2"])
    w2 = w2.at[hidden:HC, hidden:HC].set(c["w2"])

    w3 = jnp.zeros((W, W), jnp.float32)
    w3 = w3.at[:hidden, :action_dim].set(a["w3"])
    w3 = w3.at[hidden:HC, action_dim].set(c["w3"][:, 0])

    return jnp.concatenate([w1, b, w2, w3], axis=0)   # (16 + 2W, W)


def actor_critic_reference(state, params):
    """Pure-JAX reference of ActorCritic.forward (returns (mean, std, value))."""
    a, c = params["actor"], params["critic"]
    h = jnp.tanh(state @ a["w1"] + a["b1"])
    h = jnp.tanh(h @ a["w2"] + a["b2"])
    mean = h @ a["w3"] + a["b3"]
    h = jnp.tanh(state @ c["w1"] + c["b1"])
    h = jnp.tanh(h @ c["w2"] + c["b2"])
    value = (h @ c["w3"] + c["b3"])[:, 0]
    std = jnp.exp(params["log_std"])
    return mean, std, value


if __name__ == "__main__":
    key = jax.random.PRNGKey(0)
    k_param, k_state, k_state2 = jax.random.split(key, 3)

    state_dim, hidden, action_dim = 3, 32, 1
    params = init_params(k_param, state_dim, hidden, action_dim)
    blob = pack_params(params, state_dim, hidden, action_dim)

    # Small batch (single tile, one grid step).
    state = jax.random.normal(k_state, (4, state_dim), jnp.float32)
    mean, std, value = jax.block_until_ready(
        actor_critic_forward(state, blob, params["log_std"], action_dim=action_dim)
    )
    mean_ref, std_ref, value_ref = actor_critic_reference(state, params)
    assert mean.shape == (4, action_dim) and value.shape == (4,) and std.shape == (1, action_dim)
    assert jnp.allclose(mean, mean_ref, atol=2e-5, rtol=2e-5), (mean, mean_ref)
    assert jnp.allclose(value, value_ref, atol=2e-5, rtol=2e-5), (value, value_ref)
    assert jnp.allclose(std, std_ref), (std, std_ref)

    # Larger batch: exercises the pipelined batch grid (+ padding) across tiles.
    state2 = jax.random.normal(k_state2, (300, state_dim), jnp.float32)
    mean2, _, value2 = jax.block_until_ready(
        actor_critic_forward(state2, blob, params["log_std"],
                             action_dim=action_dim, block_b=128)
    )
    mean2_ref, _, value2_ref = actor_critic_reference(state2, params)
    assert jnp.allclose(mean2, mean2_ref, atol=2e-5, rtol=2e-5)
    assert jnp.allclose(value2, value2_ref, atol=2e-5, rtol=2e-5)

    print("KERNEL_OK")
</pallas_src>

<mosaic_0001>
module attributes {stable_mosaic.version = 11 : i64} {
  func.func @actor_critic_kernel(%arg0: i32, %arg1: memref<8x3xf32, #tpu.memory_space<vmem>>, %arg2: memref<272x128xf32, #tpu.memory_space<vmem>>, %arg3: memref<8x128xf32, #tpu.memory_space<vmem>>) attributes {dimension_semantics = [#tpu.dimension_semantics<parallel>], iteration_bounds = array<i64: 1>, scalar_prefetch = 0 : i64, scratch_operands = 0 : i64, tpu.core_type = #tpu.core_type<tc>, window_params = [{transform_indices = @transform_0, window_bounds = array<i64: 8, 3>}, {pipeline_mode = #tpu.pipeline_mode<synchronous>, transform_indices = @transform_1, window_bounds = array<i64: 272, 128>}, {transform_indices = @transform_2, window_bounds = array<i64: 8, 128>}]} {
    %c0 = arith.constant 0 : index
    %c0_0 = arith.constant 0 : index
    %0 = vector.load %arg1[%c0, %c0_0] : memref<8x3xf32, #tpu.memory_space<vmem>>, vector<8x3xf32>
    %1 = vector.extract_strided_slice %0 {offsets = [0, 0], sizes = [8, 1], strides = [1, 1]} : vector<8x3xf32> to vector<8x1xf32>
    %c0_1 = arith.constant 0 : index
    %c0_2 = arith.constant 0 : index
    %2 = vector.load %arg2[%c0_1, %c0_2] : memref<272x128xf32, #tpu.memory_space<vmem>>, vector<1x128xf32>
    %3 = vector.broadcast %1 : vector<8x1xf32> to vector<8x128xf32>
    %4 = vector.broadcast %2 : vector<1x128xf32> to vector<8x128xf32>
    %5 = arith.mulf %3, %4 : vector<8x128xf32>
    %c8 = arith.constant 8 : index
    %c0_3 = arith.constant 0 : index
    %6 = vector.load %arg2[%c8, %c0_3] : memref<272x128xf32, #tpu.memory_space<vmem>>, vector<1x128xf32>
    %7 = vector.broadcast %6 : vector<1x128xf32> to vector<8x128xf32>
    %8 = arith.addf %5, %7 : vector<8x128xf32>
    %9 = vector.extract_strided_slice %0 {offsets = [0, 1], sizes = [8, 1], strides = [1, 1]} : vector<8x3xf32> to vector<8x1xf32>
    %c1 = arith.constant 1 : index
    %c0_4 = arith.constant 0 : index
    %10 = vector.load %arg2[%c1, %c0_4] : memref<272x128xf32, #tpu.memory_space<vmem>>, vector<1x128xf32>
    %11 = vector.broadcast %9 : vector<8x1xf32> to vector<8x128xf32>
    %12 = vector.broadcast %10 : vector<1x128xf32> to vector<8x128xf32>
    %13 = arith.mulf %11, %12 : vector<8x128xf32>
    %14 = arith.addf %8, %13 : vector<8x128xf32>
    %15 = vector.extract_strided_slice %0 {offsets = [0, 2], sizes = [8, 1], strides = [1, 1]} : vector<8x3xf32> to vector<8x1xf32>
    %c2 = arith.constant 2 : index
    %c0_5 = arith.constant 0 : index
    %16 = vector.load %arg2[%c2, %c0_5] : memref<272x128xf32, #tpu.memory_space<vmem>>, vector<1x128xf32>
    %17 = vector.broadcast %15 : vector<8x1xf32> to vector<8x128xf32>
    %18 = vector.broadcast %16 : vector<1x128xf32> to vector<8x128xf32>
    %19 = arith.mulf %17, %18 : vector<8x128xf32>
    %20 = arith.addf %14, %19 : vector<8x128xf32>
    %21 = math.tanh %20 : vector<8x128xf32>
    %c16 = arith.constant 16 : index
    %c0_6 = arith.constant 0 : index
    %22 = vector.load %arg2[%c16, %c0_6] : memref<272x128xf32, #tpu.memory_space<vmem>>, vector<128x128xf32>
    %cst = arith.constant dense<0.000000e+00> : vector<8x128xf32>
    %23 = tpu.matmul %21, %22, %cst {dimension_numbers = #tpu.dot_dimension_numbers<[1], [0], [0], [1], [0, 0, 1, 1], [], []>} : vector<8x128xf32>, vector<128x128xf32>, vector<8x128xf32> -> vector<8x128xf32>
    %c9 = arith.constant 9 : index
    %c0_7 = arith.constant 0 : index
    %24 = vector.load %arg2[%c9, %c0_7] : memref<272x128xf32, #tpu.memory_space<vmem>>, vector<1x128xf32>
    %25 = vector.broadcast %24 : vector<1x128xf32> to vector<8x128xf32>
    %26 = arith.addf %23, %25 : vector<8x128xf32>
    %27 = math.tanh %26 : vector<8x128xf32>
    %c144 = arith.constant 144 : index
    %c0_8 = arith.constant 0 : index
    %28 = vector.load %arg2[%c144, %c0_8] : memref<272x128xf32, #tpu.memory_space<vmem>>, vector<128x128xf32>
    %cst_9 = arith.constant dense<0.000000e+00> : vector<8x128xf32>
    %29 = tpu.matmul %27, %28, %cst_9 {dimension_numbers = #tpu.dot_dimension_numbers<[1], [0], [0], [1], [0, 0, 1, 1], [], []>} : vector<8x128xf32>, vector<128x128xf32>, vector<8x128xf32> -> vector<8x128xf32>
    %c10 = arith.constant 10 : index
    %c0_10 = arith.constant 0 : index
    %30 = vector.load %arg2[%c10, %c0_10] : memref<272x128xf32, #tpu.memory_space<vmem>>, vector<1x128xf32>
    %31 = vector.broadcast %30 : vector<1x128xf32> to vector<8x128xf32>
    %32 = arith.addf %29, %31 : vector<8x128xf32>
    %c0_11 = arith.constant 0 : index
    %c0_12 = arith.constant 0 : index
    %33 = vector.load %arg3[%c0_11, %c0_12] : memref<8x128xf32, #tpu.memory_space<vmem>>, vector<8x128xf32>
    tpu.vector_store %arg3[%c0_11, %c0_12], %32 {strides = array<i32>} : memref<8x128xf32, #tpu.memory_space<vmem>>, vector<8x128xf32>,
    return
  }
  func.func @transform_0(%arg0: i32) -> (i32, i32) {
    %c0_i32 = arith.constant 0 : i32
    %c0_i32_0 = arith.constant 0 : i32
    return %arg0, %c0_i32 : i32, i32
  }
  func.func @transform_1(%arg0: i32) -> (i32, i32) {
    %c0_i32 = arith.constant 0 : i32
    %c0_i32_0 = arith.constant 0 : i32
    %c0_i32_1 = arith.constant 0 : i32
    return %c0_i32, %c0_i32_0 : i32, i32
  }
  func.func @transform_2(%arg0: i32) -> (i32, i32) {
    %c0_i32 = arith.constant 0 : i32
    %c0_i32_0 = arith.constant 0 : i32
    return %arg0, %c0_i32 : i32, i32
  }
}

</mosaic_0001>

<llo_original>
// kernel: tpu_custom_call.1
$region0: #{tpu_custom_call.1}
  #allocation0 [shape = 'u32[]', space=smem, size = 0x4, offset = 0x4, fixed_abs, tag = 'smem constant byte address 0x4 - core index']
  #allocation1 [shape = 'u32[144,128]{1,0:T(1,128)}', space=vmem, size = 0x12000, scoped, tag = 'internal scratch']
  %s0 = inlined_call_operand.vmem [shape: f32[8,3], index: 0, kind: input, shape index: {}]
  %s1 = inlined_call_operand.hbm [shape: f32[272,128], index: 1, kind: input, shape index: {}]
  %s2 = inlined_call_operand.hbm [shape: f32[8,128], index: 2, kind: output, shape index: {}]
  %s3 = sld [smem:[#allocation0]]
  $region22: #{tpu_custom_call.1} parent=0
    _
  %s5 = ssub.s32 1, %s3
  %s6 = scalar_select 0, %s5, %s3
  $region1: #{tpu_custom_call.1} parent=0
    #allocation2 [shape = 'u8[139264]{0}', space=vmem, size = 0x22000, scoped, tag = 'input window, operand 1, single buffered']
    #allocation3 [shape = 's32[1]{0}', space=sflag, size = 0x4, scoped, tag = 'scoped memory for tpu_custom_call.1']
    #allocation4 [shape = 's32[1]{0}', space=sflag, size = 0x4, scoped, tag = 'scoped memory for tpu_custom_call.1']
    #allocation5 [shape = 'u8[4096]{0}', space=vmem, size = 0x1000, scoped, tag = 'output window, operand 0, single buffered']
    %7 = vsyncpa [#allocation3], 0
    %8 = vsyncpa [#allocation4], 0
    // Predicated region
    $region2: #{tpu_custom_call.1} parent=1 // pred_check
      _
    $region3: #{tpu_custom_call.1} parent=1 // pred_check_branch
      %10 = sbr.rel (0) target = $region5
    $region4: #{tpu_custom_call.1} parent=1 // pred_region
      _
    $region5: #{tpu_custom_call.1} parent=1 // pred_fallthru
      _
    // Predicated region
    $region6: #{tpu_custom_call.1} parent=1 // pred_check
      _
    $region7: #{tpu_custom_call.1} parent=1 // pred_check_branch
      %12 = sbr.rel (0) target = $region9
    $region8: #{tpu_custom_call.1} parent=1 // pred_region
      %s14 = ssub.s32 4352, 4352
      %15 = vsyncadd [#allocation3], %s14
      %s16 = sshll.u32 [#allocation2], 4
      %s17 = int_to_ptr.vmem [resolvable:$true] %s16
      %22 = dma.hbm_to_vmem [thread:$0]  %s1, 4352, %s17, [#allocation3], 128, 128, 8
    $region9: #{tpu_custom_call.1} parent=1 // pred_fallthru
      _
    // Predicated region
    $region10: #{tpu_custom_call.1} parent=1 // pred_check
      _
    $region11: #{tpu_custom_call.1} parent=1 // pred_check_branch
      %24 = sbr.rel (0) target = $region13
    $region12: #{tpu_custom_call.1} parent=1 // pred_region
      %25 = dma.done [#allocation3], 4352
    $region13: #{tpu_custom_call.1} parent=1 // pred_fallthru
      _
    %v26 = vld [vmem:[%s0] sm:$0xff]
    %v27 = vld [vmem:[#allocation2] sm:$0x1]
    %29 = vset.pattern.permute.xlu0 0
    %30 = vperm.xlu0 %29, %v26
    %v31 = vpop.permute.xlu0 %30
    %v33 = vlaneseq
    %v34 = vshrl.u32 %v33, 7
    %v35 = vsub.s32 0, %v34
    %v36 = vrot.slane %v27, %v35
    %v37 = vmul.f32 %v31, %v36
    %v38 = vld [vmem:[#allocation2 + $0x8] sm:$0x1]
    %v39 = vlaneseq
    %v40 = vshrl.u32 %v39, 7
    %v41 = vsub.s32 0, %v40
    %v42 = vrot.slane %v38, %v41
    %v43 = vadd.f32 %v37, %v42
    %v44 = vld [vmem:[#allocation2 + $0x1] sm:$0x1]
    %45 = vset.pattern.permute.xlu0 1
    %46 = vperm.xlu0 %45, %v26
    %v47 = vpop.permute.xlu0 %46
    %v49 = vlaneseq
    %v50 = vshrl.u32 %v49, 7
    %v51 = vsub.s32 0, %v50
    %v52 = vrot.slane %v44, %v51
    %v53 = vmul.f32 %v47, %v52
    %v54 = vadd.f32 %v43, %v53
    %v55 = vld [vmem:[#allocation2 + $0x2] sm:$0x1]
    %56 = vset.pattern.permute.xlu0 2
    %57 = vperm.xlu0 %56, %v26
    %v58 = vpop.permute.xlu0 %57
    %v60 = vlaneseq
    %v61 = vshrl.u32 %v60, 7
    %v62 = vsub.s32 0, %v61
    %v63 = vrot.slane %v55, %v62
    %v64 = vmul.f32 %v58, %v63
    %v65 = vadd.f32 %v54, %v64
    %v66 = vtanh.pop %v65
    %v67 = vld [vmem:[#allocation2 + $0x10] sm:$0xff]
    %v68 = vld [vmem:[#allocation2 + $0x18] sm:$0xff]
    %v69 = vld [vmem:[#allocation2 + $0x20] sm:$0xff]
    %v70 = vld [vmem:[#allocation2 + $0x28] sm:$0xff]
    %v71 = vld [vmem:[#allocation2 + $0x30] sm:$0xff]
    %v72 = vld [vmem:[#allocation2 + $0x38] sm:$0xff]
    %v73 = vld [vmem:[#allocation2 + $0x40] sm:$0xff]
    %v74 = vld [vmem:[#allocation2 + $0x48] sm:$0xff]
    %v75 = vld [vmem:[#allocation2 + $0x50] sm:$0xff]
    %v76 = vld [vmem:[#allocation2 + $0x58] sm:$0xff]
    %v77 = vld [vmem:[#allocation2 + $0x60] sm:$0xff]
    %v78 = vld [vmem:[#allocation2 + $0x68] sm:$0xff]
    %v79 = vld [vmem:[#allocation2 + $0x70] sm:$0xff]
    %v80 = vld [vmem:[#allocation2 + $0x78] sm:$0xff]
    %v81 = vld [vmem:[#allocation2 + $0x80] sm:$0xff]
    %v82 = vld [vmem:[#allocation2 + $0x88] sm:$0xff]
    %v83 = vld [vmem:[#allocation2 + $0x9] sm:$0x1]
    %v84 = vlaneseq
    %v85 = vshrl.u32 %v84, 7
    %v86 = vsub.s32 0, %v85
    %v87 = vrot.slane %v83, %v86
    %88 = vmatprep.subr.mxu0 0.0
    %89 = vmatpush1.msra.mxu0 %v67
    %90 = vmatprep.subr.mxu0 0.0
    %91 = vmatpush1.msra.mxu0 %v68
    %92 = vmatprep.subr.mxu0 0.0
    %93 = vmatpush1.msra.mxu0 %v69
    %94 = vmatprep.subr.mxu0 0.0
    %95 = vmatpush1.msra.mxu0 %v70
    %96 = vmatprep.subr.mxu0 0.0
    %97 = vmatpush1.msra.mxu0 %v71
    %98 = vmatprep.subr.mxu0 0.0
    %99 = vmatpush1.msra.mxu0 %v72
    %100 = vmatprep.subr.mxu0 0.0
    %101 = vmatpush1.msra.mxu0 %v73
    %102 = vmatprep.subr.mxu0 0.0
    %103 = vmatpush1.msra.mxu0 %v74
    %104 = vmatprep.subr.mxu0 0.0
    %105 = vmatpush1.msra.mxu0 %v75
    %106 = vmatprep.subr.mxu0 0.0
    %107 = vmatpush1.msra.mxu0 %v76
    %108 = vmatprep.subr.mxu0 0.0
    %109 = vmatpush1.msra.mxu0 %v77
    %110 = vmatprep.subr.mxu0 0.0
    %111 = vmatpush1.msra.mxu0 %v78
    %112 = vmatprep.subr.mxu0 0.0
    %113 = vmatpush1.msra.mxu0 %v79
    %114 = vmatprep.subr.mxu0 0.0
    %115 = vmatpush1.msra.mxu0 %v80
    %116 = vmatprep.subr.mxu0 0.0
    %117 = vmatpush1.msra.mxu0 %v81
    %118 = vmatprep.subr.mxu0 0.0
    %119 = vmatpush1.msra.mxu0 %v82
    %120 = vmatprep.subr.mxu0 0.0
    %121 = vmatpush1.msra.mxu0 0.0
    %122 = vmatprep.subr.mxu0 0.0
    %123 = vmatpush1.msra.mxu0 0.0
    %124 = vmatprep.subr.mxu0 0.0
    %125 = vmatpush1.msra.mxu0 0.0
    %126 = vmatprep.subr.mxu0 0.0
    %127 = vmatpush1.msra.mxu0 0.0
    %128 = vmatprep.subr.mxu0 0.0
    %129 = vmatpush1.msra.mxu0 0.0
    %130 = vmatprep.subr.mxu0 0.0
    %131 = vmatpush1.msra.mxu0 0.0
    %132 = vmatprep.subr.mxu0 0.0
    %133 = vmatpush1.msra.mxu0 0.0
    %134 = vmatprep.subr.mxu0 0.0
    %135 = vmatpush1.msra.mxu0 0.0
    %136 = vmatprep.subr.mxu0 0.0
    %137 = vmatpush1.msra.mxu0 0.0
    %138 = vmatprep.subr.mxu0 0.0
    %139 = vmatpush1.msra.mxu0 0.0
    %140 = vmatprep.subr.mxu0 0.0
    %141 = vmatpush1.msra.mxu0 0.0
    %142 = vmatprep.subr.mxu0 0.0
    %143 = vmatpush1.msra.mxu0 0.0
    %144 = vmatprep.subr.mxu0 0.0
    %145 = vmatpush1.msra.mxu0 0.0
    %146 = vmatprep.subr.mxu0 0.0
    %147 = vmatpush1.msra.mxu0 0.0
    %148 = vmatprep.subr.mxu0 0.0
    %149 = vmatpush1.msra.mxu0 0.0
    %150 = vmatprep.subr.mxu0 0.0
    %151 = vmatpush1.msra.mxu0 0.0
    %152 = vmatprep.mubr.f32.mxu0 0.0
    %153 = vmatmul.mubr.f32.gmra.mrb[0].mxu0 %v66
    %v154 = vpop.f32.mrb[0].mxu0
    %v155 = vadd.f32 %v87, %v154
    %v156 = vpop.f32.mrb[0].mxu0
    %157 = vdwg.mxu0
    %v158 = vtanh.pop %v155
    %v159 = vld [vmem:[#allocation2 + $0x90] sm:$0xff]
    %v160 = vld [vmem:[#allocation2 + $0x98] sm:$0xff]
    %v161 = vld [vmem:[#allocation2 + $0xa0] sm:$0xff]
    %v162 = vld [vmem:[#allocation2 + $0xa8] sm:$0xff]
    %v163 = vld [vmem:[#allocation2 + $0xb0] sm:$0xff]
    %v164 = vld [vmem:[#allocation2 + $0xb8] sm:$0xff]
    %v165 = vld [vmem:[#allocation2 + $0xc0] sm:$0xff]
    %v166 = vld [vmem:[#allocation2 + $0xc8] sm:$0xff]
    %v167 = vld [vmem:[#allocation2 + $0xd0] sm:$0xff]
    %v168 = vld [vmem:[#allocation2 + $0xd8] sm:$0xff]
    %v169 = vld [vmem:[#allocation2 + $0xe0] sm:$0xff]
    %v170 = vld [vmem:[#allocation2 + $0xe8] sm:$0xff]
    %v171 = vld [vmem:[#allocation2 + $0xf0] sm:$0xff]
    %v172 = vld [vmem:[#allocation2 + $0xf8] sm:$0xff]
    %v173 = vld [vmem:[#allocation2 + $0x100] sm:$0xff]
    %v174 = vld [vmem:[#allocation2 + $0x108] sm:$0xff]
    %v175 = vld [vmem:[#allocation2 + $0xa] sm:$0x1]
    %v176 = vlaneseq
    %v177 = vshrl.u32 %v176, 7
    %v178 = vsub.s32 0, %v177
    %v179 = vrot.slane %v175, %v178
    %180 = vmatprep.subr.mxu0 0.0
    %181 = vmatpush1.msra.mxu0 %v159
    %182 = vmatprep.subr.mxu0 0.0
    %183 = vmatpush1.msra.mxu0 %v160
    %184 = vmatprep.subr.mxu0 0.0
    %185 = vmatpush1.msra.mxu0 %v161
    %186 = vmatprep.subr.mxu0 0.0
    %187 = vmatpush1.msra.mxu0 %v162
    %188 = vmatprep.subr.mxu0 0.0
    %189 = vmatpush1.msra.mxu0 %v163
    %190 = vmatprep.subr.mxu0 0.0
    %191 = vmatpush1.msra.mxu0 %v164
    %192 = vmatprep.subr.mxu0 0.0
    %193 = vmatpush1.msra.mxu0 %v165
    %194 = vmatprep.subr.mxu0 0.0
    %195 = vmatpush1.msra.mxu0 %v166
    %196 = vmatprep.subr.mxu0 0.0
    %197 = vmatpush1.msra.mxu0 %v167
    %198 = vmatprep.subr.mxu0 0.0
    %199 = vmatpush1.msra.mxu0 %v168
    %200 = vmatprep.subr.mxu0 0.0
    %201 = vmatpush1.msra.mxu0 %v169
    %202 = vmatprep.subr.mxu0 0.0
    %203 = vmatpush1.msra.mxu0 %v170
    %204 = vmatprep.subr.mxu0 0.0
    %205 = vmatpush1.msra.mxu0 %v171
    %206 = vmatprep.subr.mxu0 0.0
    %207 = vmatpush1.msra.mxu0 %v172
    %208 = vmatprep.subr.mxu0 0.0
    %209 = vmatpush1.msra.mxu0 %v173
    %210 = vmatprep.subr.mxu0 0.0
    %211 = vmatpush1.msra.mxu0 %v174
    %212 = vmatprep.subr.mxu0 0.0
    %213 = vmatpush1.msra.mxu0 0.0
    %214 = vmatprep.subr.mxu0 0.0
    %215 = vmatpush1.msra.mxu0 0.0
    %216 = vmatprep.subr.mxu0 0.0
    %217 = vmatpush1.msra.mxu0 0.0
    %218 = vmatprep.subr.mxu0 0.0
    %219 = vmatpush1.msra.mxu0 0.0
    %220 = vmatprep.subr.mxu0 0.0
    %221 = vmatpush1.msra.mxu0 0.0
    %222 = vmatprep.subr.mxu0 0.0
    %223 = vmatpush1.msra.mxu0 0.0
    %224 = vmatprep.subr.mxu0 0.0
    %225 = vmatpush1.msra.mxu0 0.0
    %226 = vmatprep.subr.mxu0 0.0
    %227 = vmatpush1.msra.mxu0 0.0
    %228 = vmatprep.subr.mxu0 0.0
    %229 = vmatpush1.msra.mxu0 0.0
    %230 = vmatprep.subr.mxu0 0.0
    %231 = vmatpush1.msra.mxu0 0.0
    %232 = vmatprep.subr.mxu0 0.0
    %233 = vmatpush1.msra.mxu0 0.0
    %234 = vmatprep.subr.mxu0 0.0
    %235 = vmatpush1.msra.mxu0 0.0
    %236 = vmatprep.subr.mxu0 0.0
    %237 = vmatpush1.msra.mxu0 0.0
    %238 = vmatprep.subr.mxu0 0.0
    %239 = vmatpush1.msra.mxu0 0.0
    %240 = vmatprep.subr.mxu0 0.0
    %241 = vmatpush1.msra.mxu0 0.0
    %242 = vmatprep.subr.mxu0 0.0
    %243 = vmatpush1.msra.mxu0 0.0
    %244 = vmatprep.mubr.f32.mxu0 0.0
    %245 = vmatmul.mubr.f32.gmra.mrb[0].mxu0 %v158
    %v246 = vpop.f32.mrb[0].mxu0
    %v247 = vadd.f32 %v179, %v246
    %v248 = vpop.f32.mrb[0].mxu0
    %249 = vdwg.mxu0
    %250 = vst [vmem:[#allocation5] sm:$0xff] %v247
    // Predicated region
    $region14: #{tpu_custom_call.1} parent=1 // pred_check
      _
    $region15: #{tpu_custom_call.1} parent=1 // pred_check_branch
      %252 = sbr.rel (0) target = $region17
    $region16: #{tpu_custom_call.1} parent=1 // pred_region
      %s254 = ssub.s32 128, 128
      %255 = vsyncadd [#allocation4], %s254
      %s257 = sshll.u32 [#allocation5], 4
      %s258 = int_to_ptr.vmem [resolvable:$true] %s257
      %260 = dma.vmem_to_hbm [thread:$0]  %s258, 128, %s2, [#allocation4]
    $region17: #{tpu_custom_call.1} parent=1 // pred_fallthru
      _
    // Predicated region
    $region18: #{tpu_custom_call.1} parent=1 // pred_check
      _
    $region19: #{tpu_custom_call.1} parent=1 // pred_check_branch
      %262 = sbr.rel (0) target = $region21
    $region20: #{tpu_custom_call.1} parent=1 // pred_region
      %263 = dma.done [#allocation4], 128
    $region21: #{tpu_custom_call.1} parent=1 // pred_fallthru
      _
    %264 = vsyncpa [#allocation3], 1
    %265 = vsyncpa [#allocation4], 1

</llo_original>
